<compile_context>
chip_gen: v5e
topology: v5e:2x2
jax: 0.10.0
libtpu: 0.0.40
codegen_flags: <defaults>
</compile_context>

<pallas_src>
import jax
import jax.numpy as jnp
from jax.experimental import pallas as pl
from jax.experimental.pallas import tpu as pltpu

HIDDEN = 128
# Batch tile: multiple of 256 (v6e/v7x 256x256 MXU) and 128 (v5e 128x128 MXU),
# and of 128 for the lane-dense output slab. Raise towards 1024-2048 on
# v5e/v6e (128 MiB VMEM); keep ~512-1024 on v7x (64 MiB VMEM).
TILE_B = 512


def _mlp_kernel_vec_out(b2_ref, x_ref, w1_ref, b1_ref, w2t_ref, o_ref):
    """D_out == 1 path. b2_ref is a (1,) SMEM scalar (scalar prefetch)."""
    # Layer 1 on the MXU with f32 accumulation; bias + ReLU on the VPU.
    h = jnp.dot(x_ref[...], w1_ref[...], preferred_element_type=jnp.float32)
    h = jnp.maximum(h + b1_ref[...].astype(jnp.float32), 0.0)
    # Layer 2 is a matrix-vector product: VPU multiply + lane reduction (XLU)
    # instead of an N=1 MXU matmul that would use <1% of the systolic array.
    y = jnp.sum(h * w2t_ref[...].astype(jnp.float32), axis=-1)      # (tile_b,)
    y = y + b2_ref[0]                                               # scalar add (SMEM)
    # Lane-dense store: batch on the lane axis of a (1, tile_b) slab.
    o_ref[...] = y[None, :].astype(o_ref.dtype)


def _mlp_kernel_general(x_ref, w1_ref, b1_ref, w2_ref, b2_ref, o_ref):
    """General D_out path: both layers on the MXU, batch-tiled."""
    h = jnp.dot(x_ref[...], w1_ref[...], preferred_element_type=jnp.float32)
    h = jnp.maximum(h + b1_ref[...].astype(jnp.float32), 0.0)
    y = jnp.dot(h.astype(w2_ref.dtype), w2_ref[...],
                preferred_element_type=jnp.float32)
    o_ref[...] = (y + b2_ref[...].astype(jnp.float32)).astype(o_ref.dtype)


def mlp_forward(x, w1, b1, w2, b2, *, tile_b=TILE_B):
    """relu(x @ w1 + b1) @ w2 + b2, then squeeze(-1) (removed only if D_out == 1)."""
    B, D_in = x.shape
    D_out = w2.shape[1]

    # --- batch tiling (weights stay VMEM-resident; activations stream) ---
    if B <= tile_b:
        tb, B_pad = B, B            # single full-batch tile: no (8,128) constraint
    else:
        tb = tile_b
        assert tb % 128 == 0, "tile_b must be a multiple of 128 when tiling"
        B_pad = pl.cdiv(B, tb) * tb
    if B_pad != B:
        x = jnp.pad(x, ((0, B_pad - B), (0, 0)))   # ragged last tile, sliced off below
    grid = (B_pad // tb,)
    cparams = pltpu.CompilerParams(dimension_semantics=("parallel",))

    if D_out == 1:
        out = pl.pallas_call(
            _mlp_kernel_vec_out,
            out_shape=jax.ShapeDtypeStruct((1, B_pad), x.dtype),
            grid_spec=pltpu.PrefetchScalarGridSpec(
                num_scalar_prefetch=1,                       # b2 scalar -> SMEM
                grid=grid,
                in_specs=[
                    pl.BlockSpec((tb, D_in), lambda i, b2s: (i, 0)),
                    pl.BlockSpec((D_in, HIDDEN), lambda i, b2s: (0, 0)),
                    pl.BlockSpec((1, HIDDEN), lambda i, b2s: (0, 0)),
                    pl.BlockSpec((1, HIDDEN), lambda i, b2s: (0, 0)),
                ],
                out_specs=pl.BlockSpec((1, tb), lambda i, b2s: (0, i)),
            ),
            compiler_params=cparams,
        )(b2.reshape(-1), x, w1, b1, w2.reshape(1, HIDDEN))
        # Output already is the squeezed vector (batch on lanes) — just flatten.
        return out.reshape(B_pad)[:B]

    out = pl.pallas_call(
        _mlp_kernel_general,
        out_shape=jax.ShapeDtypeStruct((B_pad, D_out), x.dtype),
        grid_spec=pltpu.PrefetchScalarGridSpec(
            num_scalar_prefetch=0,
            grid=grid,
            in_specs=[
                pl.BlockSpec((tb, D_in), lambda i: (i, 0)),
                pl.BlockSpec((D_in, HIDDEN), lambda i: (0, 0)),
                pl.BlockSpec((1, HIDDEN), lambda i: (0, 0)),
                pl.BlockSpec((HIDDEN, D_out), lambda i: (0, 0)),
                pl.BlockSpec((1, D_out), lambda i: (0, 0)),
            ],
            out_specs=pl.BlockSpec((tb, D_out), lambda i: (i, 0)),
        ),
        compiler_params=cparams,
    )(x, w1, b1, w2, b2)
    return out[:B]


def init_mlp_params(key, input_dim, output_dim, dtype=jnp.float32):
    """Matches MLP._initialize_weights: weight ~ N(0, 0.1), bias = 0.1."""
    k1, k2 = jax.random.split(key)
    w1 = (0.1 * jax.random.normal(k1, (input_dim, HIDDEN))).astype(dtype)
    b1 = jnp.full((1, HIDDEN), 0.1, dtype=dtype)
    w2 = (0.1 * jax.random.normal(k2, (HIDDEN, output_dim))).astype(dtype)
    b2 = jnp.full((1, output_dim), 0.1, dtype=dtype)
    return w1, b1, w2, b2


if __name__ == "__main__":
    key = jax.random.PRNGKey(0)
    kx, kp, kx2 = jax.random.split(key, 3)

    # --- Case 1: the module's typical use (output_dim=1 -> squeeze to (B,)) ---
    batch, input_dim, output_dim = 8, 32, 1
    x = jax.random.normal(kx, (batch, input_dim), dtype=jnp.float32)
    w1, b1, w2, b2 = init_mlp_params(kp, input_dim, output_dim)

    out = jax.block_until_ready(mlp_forward(x, w1, b1, w2, b2))
    ref = (jnp.maximum(x @ w1 + b1, 0.0) @ w2 + b2)[..., 0]
    assert out.shape == (batch,), out.shape
    assert jnp.allclose(out, ref, atol=1e-5, rtol=1e-5)

    # --- Case 2: exercise the multi-tile (grid > 1) lane-dense output path ---
    xb = jax.random.normal(kx2, (256, input_dim), dtype=jnp.float32)
    outb = jax.block_until_ready(mlp_forward(xb, w1, b1, w2, b2, tile_b=128))
    refb = (jnp.maximum(xb @ w1 + b1, 0.0) @ w2 + b2)[..., 0]
    assert outb.shape == (256,), outb.shape
    assert jnp.allclose(outb, refb, atol=1e-5, rtol=1e-5)

    # --- Case 3: general output_dim (>1); squeeze(-1) is a no-op ---
    w1g, b1g, w2g, b2g = init_mlp_params(kp, input_dim, 4)
    outg = jax.block_until_ready(mlp_forward(x, w1g, b1g, w2g, b2g))
    refg = jnp.maximum(x @ w1g + b1g, 0.0) @ w2g + b2g
    assert outg.shape == (batch, 4), outg.shape
    assert jnp.allclose(outg, refg, atol=1e-5, rtol=1e-5)

    print("KERNEL_OK")
</pallas_src>

<mosaic_0001>
module attributes {stable_mosaic.version = 11 : i64} {
  func.func @_mlp_kernel_vec_out(%arg0: i32, %arg1: memref<1xf32, #tpu.memory_space<smem>>, %arg2: memref<8x32xf32, #tpu.memory_space<vmem>>, %arg3: memref<32x128xf32, #tpu.memory_space<vmem>>, %arg4: memref<1x128xf32, #tpu.memory_space<vmem>>, %arg5: memref<1x128xf32, #tpu.memory_space<vmem>>, %arg6: memref<1x8xf32, #tpu.memory_space<vmem>>) attributes {dimension_semantics = [#tpu.dimension_semantics<parallel>], iteration_bounds = array<i64: 1>, scalar_prefetch = 1 : i64, scratch_operands = 0 : i64, tpu.core_type = #tpu.core_type<tc>, window_params = [{transform_indices = @transform_0, window_bounds = array<i64: 8, 32>}, {pipeline_mode = #tpu.pipeline_mode<synchronous>, transform_indices = @transform_1, window_bounds = array<i64: 32, 128>}, {pipeline_mode = #tpu.pipeline_mode<synchronous>, transform_indices = @transform_2, window_bounds = array<i64: 1, 128>}, {pipeline_mode = #tpu.pipeline_mode<synchronous>, transform_indices = @transform_3, window_bounds = array<i64: 1, 128>}, {transform_indices = @transform_4, window_bounds = array<i64: 1, 8>}]} {
    %c0 = arith.constant 0 : index
    %c0_0 = arith.constant 0 : index
    %0 = vector.load %arg2[%c0, %c0_0] : memref<8x32xf32, #tpu.memory_space<vmem>>, vector<8x32xf32>
    %c0_1 = arith.constant 0 : index
    %c0_2 = arith.constant 0 : index
    %1 = vector.load %arg3[%c0_1, %c0_2] : memref<32x128xf32, #tpu.memory_space<vmem>>, vector<32x128xf32>
    %cst = arith.constant dense<0.000000e+00> : vector<8x128xf32>
    %2 = tpu.matmul %0, %1, %cst {dimension_numbers = #tpu.dot_dimension_numbers<[1], [0], [0], [1], [0, 0, 1, 1], [], []>} : vector<8x32xf32>, vector<32x128xf32>, vector<8x128xf32> -> vector<8x128xf32>
    %c0_3 = arith.constant 0 : index
    %c0_4 = arith.constant 0 : index
    %3 = vector.load %arg4[%c0_3, %c0_4] : memref<1x128xf32, #tpu.memory_space<vmem>>, vector<1x128xf32>
    %4 = vector.broadcast %3 : vector<1x128xf32> to vector<8x128xf32>
    %5 = arith.addf %2, %4 : vector<8x128xf32>
    %cst_5 = arith.constant 0.000000e+00 : f32
    %6 = vector.broadcast %cst_5 : f32 to vector<8x128xf32>
    %7 = arith.maximumf %5, %6 : vector<8x128xf32>
    %c0_6 = arith.constant 0 : index
    %c0_7 = arith.constant 0 : index
    %8 = vector.load %arg5[%c0_6, %c0_7] : memref<1x128xf32, #tpu.memory_space<vmem>>, vector<1x128xf32>
    %9 = vector.broadcast %8 : vector<1x128xf32> to vector<8x128xf32>
    %10 = arith.mulf %7, %9 : vector<8x128xf32>
    %cst_8 = arith.constant dense<0.000000e+00> : vector<8xf32>
    %11 = vector.multi_reduction <add>, %10, %cst_8 [1] : vector<8x128xf32> to vector<8xf32>
    %c0_9 = arith.constant 0 : index
    %12 = memref.load %arg1[%c0_9] : memref<1xf32, #tpu.memory_space<smem>>
    %13 = vector.broadcast %12 : f32 to vector<8xf32>
    %14 = arith.addf %11, %13 : vector<8xf32>
    %15 = vector.shape_cast %14 : vector<8xf32> to vector<1x8xf32>
    %c0_10 = arith.constant 0 : index
    %c0_11 = arith.constant 0 : index
    %16 = vector.load %arg6[%c0_10, %c0_11] : memref<1x8xf32, #tpu.memory_space<vmem>>, vector<1x8xf32>
    tpu.vector_store %arg6[%c0_10, %c0_11], %15 {strides = array<i32>} : memref<1x8xf32, #tpu.memory_space<vmem>>, vector<1x8xf32>,
    return
  }
  func.func @transform_0(%arg0: i32, %arg1: memref<1xf32, #tpu.memory_space<smem>>) -> (i32, i32) {
    %c0_i32 = arith.constant 0 : i32
    %c0_i32_0 = arith.constant 0 : i32
    return %arg0, %c0_i32 : i32, i32
  }
  func.func @transform_1(%arg0: i32, %arg1: memref<1xf32, #tpu.memory_space<smem>>) -> (i32, i32) {
    %c0_i32 = arith.constant 0 : i32
    %c0_i32_0 = arith.constant 0 : i32
    %c0_i32_1 = arith.constant 0 : i32
    return %c0_i32, %c0_i32_0 : i32, i32
  }
  func.func @transform_2(%arg0: i32, %arg1: memref<1xf32, #tpu.memory_space<smem>>) -> (i32, i32) {
    %c0_i32 = arith.constant 0 : i32
    %c0_i32_0 = arith.constant 0 : i32
    %c0_i32_1 = arith.constant 0 : i32
    return %c0_i32, %c0_i32_0 : i32, i32
  }
  func.func @transform_3(%arg0: i32, %arg1: memref<1xf32, #tpu.memory_space<smem>>) -> (i32, i32) {
    %c0_i32 = arith.constant 0 : i32
    %c0_i32_0 = arith.constant 0 : i32
    %c0_i32_1 = arith.constant 0 : i32
    return %c0_i32, %c0_i32_0 : i32, i32
  }
  func.func @transform_4(%arg0: i32, %arg1: memref<1xf32, #tpu.memory_space<smem>>) -> (i32, i32) {
    %c0_i32 = arith.constant 0 : i32
    %c0_i32_0 = arith.constant 0 : i32
    return %c0_i32, %arg0 : i32, i32
  }
}

</mosaic_0001>

<llo_original>
// kernel: tpu_custom_call.1
$region0: #{tpu_custom_call.1}
  #allocation0 [shape = 'u32[]', space=smem, size = 0x4, offset = 0x4, fixed_abs, tag = 'smem constant byte address 0x4 - core index']
  #allocation1 [shape = 'u32[72,128]{1,0:T(1,128)}', space=vmem, size = 0x9000, scoped, tag = 'internal scratch']
  #allocation2 [shape = 's32[1]{0}', space=sflag, size = 0x4, scoped, tag = 'scoped memory for tpu_custom_call.1']
  #allocation3 [shape = 'f32[1]{0:T(128)S(6)}', space=smem, size = 0x200, scoped, tag = 'prefetched SMEM operand 0']
  %s0 = inlined_call_operand.<no memory space> [shape: f32[1], index: 0, kind: input, shape index: {}]
  %s1 = inlined_call_operand.hbm [shape: f32[8,32], index: 1, kind: input, shape index: {}]
  %s2 = inlined_call_operand.hbm [shape: f32[32,128], index: 2, kind: input, shape index: {}]
  %s3 = inlined_call_operand.vmem [shape: f32[1,128], index: 3, kind: input, shape index: {}]
  %s4 = inlined_call_operand.vmem [shape: f32[1,128], index: 4, kind: input, shape index: {}]
  %s5 = inlined_call_operand.hbm [shape: f32[1,8], index: 5, kind: output, shape index: {}]
  %s6 = sld [smem:[#allocation0]]
  $region34: #{tpu_custom_call.1} parent=0
    _
  %s8 = ssub.s32 1, %s6
  %s9 = scalar_select 0, %s8, %s6
  %10 = sst [smem:[#allocation3]] %s0
  $region1: #{tpu_custom_call.1} parent=0
    #allocation4 [shape = 'u8[4096]{0}', space=vmem, size = 0x1000, scoped, tag = 'input window, operand 1, single buffered']
    #allocation5 [shape = 's32[1]{0}', space=sflag, size = 0x4, scoped, tag = 'scoped memory for tpu_custom_call.1']
    #allocation6 [shape = 's32[1]{0}', space=sflag, size = 0x4, scoped, tag = 'scoped memory for tpu_custom_call.1']
    #allocation7 [shape = 'u8[16384]{0}', space=vmem, size = 0x4000, scoped, tag = 'input window, operand 2, single buffered']
    #allocation8 [shape = 's32[1]{0}', space=sflag, size = 0x4, scoped, tag = 'scoped memory for tpu_custom_call.1']
    #allocation9 [shape = 'u8[512]{0}', space=vmem, size = 0x400, scoped, tag = 'output window, operand 0, single buffered']
    %11 = vsyncpa [#allocation5], 0
    %12 = vsyncpa [#allocation8], 0
    %13 = vsyncpa [#allocation6], 0
    // Predicated region
    $region2: #{tpu_custom_call.1} parent=1 // pred_check
      _
    $region3: #{tpu_custom_call.1} parent=1 // pred_check_branch
      %15 = sbr.rel (0) target = $region5
    $region4: #{tpu_custom_call.1} parent=1 // pred_region
      %17 = vsyncadd [#allocation5], 0
      %s19 = sshll.u32 %s1, 4
      %s20 = int_to_ptr.hbm [resolvable:$true] %s19
      %s21 = sshll.u32 [#allocation4], 4
      %s22 = int_to_ptr.vmem [resolvable:$true] %s21
      %24 = dma.hbm_to_vmem [thread:$0]  %s20, 128, %s22, [#allocation5]
    $region5: #{tpu_custom_call.1} parent=1 // pred_fallthru
      _
    // Predicated region
    $region6: #{tpu_custom_call.1} parent=1 // pred_check
      _
    $region7: #{tpu_custom_call.1} parent=1 // pred_check_branch
      %26 = sbr.rel (0) target = $region9
    $region8: #{tpu_custom_call.1} parent=1 // pred_region
      %28 = vsyncadd [#allocation8], 0
      %s29 = sshll.u32 %s2, 4
      %s30 = int_to_ptr.hbm [resolvable:$true] %s29
      %s31 = sshll.u32 [#allocation7], 4
      %s32 = int_to_ptr.vmem [resolvable:$true] %s31
      %37 = dma.hbm_to_vmem [thread:$0]  %s30, 512, %s32, [#allocation8], 128, 128, 8
    $region9: #{tpu_custom_call.1} parent=1 // pred_fallthru
      _
    // Predicated region
    $region10: #{tpu_custom_call.1} parent=1 // pred_check
      _
    $region11: #{tpu_custom_call.1} parent=1 // pred_check_branch
      %39 = sbr.rel (0) target = $region13
    $region12: #{tpu_custom_call.1} parent=1 // pred_region
      _
    $region13: #{tpu_custom_call.1} parent=1 // pred_fallthru
      _
    // Predicated region
    $region14: #{tpu_custom_call.1} parent=1 // pred_check
      _
    $region15: #{tpu_custom_call.1} parent=1 // pred_check_branch
      %41 = sbr.rel (0) target = $region17
    $region16: #{tpu_custom_call.1} parent=1 // pred_region
      _
    $region17: #{tpu_custom_call.1} parent=1 // pred_fallthru
      _
    // Predicated region
    $region18: #{tpu_custom_call.1} parent=1 // pred_check
      _
    $region19: #{tpu_custom_call.1} parent=1 // pred_check_branch
      %43 = sbr.rel (0) target = $region21
    $region20: #{tpu_custom_call.1} parent=1 // pred_region
      %45 = dma.done [#allocation5], 128
    $region21: #{tpu_custom_call.1} parent=1 // pred_fallthru
      _
    // Predicated region
    $region22: #{tpu_custom_call.1} parent=1 // pred_check
      _
    $region23: #{tpu_custom_call.1} parent=1 // pred_check_branch
      %47 = sbr.rel (0) target = $region25
    $region24: #{tpu_custom_call.1} parent=1 // pred_region
      %49 = dma.done [#allocation8], 512
    $region25: #{tpu_custom_call.1} parent=1 // pred_fallthru
      _
    %v50 = vld [vmem:[#allocation4] sm:$0xff]
    %v51 = vld [vmem:[#allocation7] sm:$0xff]
    %v52 = vld [vmem:[#allocation7 + $0x8] sm:$0xff]
    %v53 = vld [vmem:[#allocation7 + $0x10] sm:$0xff]
    %v54 = vld [vmem:[#allocation7 + $0x18] sm:$0xff]
    %v55 = vld [vmem:[%s3] sm:$0x1]
    %v57 = vperm.slane %v55, 0
    %vm59 = vcmask 261120
    %v61 = vsel %vm59, %v50, 0
    %63 = vmatpush.msra.mxu0 0.0
    %64 = vmatpush.msra.mxu0 0.0
    %65 = vmatpush.msra.mxu0 0.0
    %66 = vmatpush.msra.mxu0 0.0
    %67 = vmatpush.msra.mxu0 0.0
    %68 = vmatpush.msra.mxu0 0.0
    %69 = vmatpush.msra.mxu0 0.0
    %70 = vmatpush.msra.mxu0 0.0
    %71 = vmatpush.msra.mxu0 0.0
    %72 = vmatpush.msra.mxu0 0.0
    %73 = vmatpush.msra.mxu0 0.0
    %74 = vmatpush.msra.mxu0 0.0
    %75 = vmatpush.msra.mxu0 %v54
    %76 = vmatpush.msra.mxu0 %v53
    %77 = vmatpush.msra.mxu0 %v52
    %78 = vmatpush.msra.mxu0 %v51
    %79 = vmatmul.f32.gmra.mxu0 %v61
    %v80 = vpop.f32.mrf.mxu0
    %v81 = vadd.f32 %v57, %v80
    %82 = vdwg.mxu0
    %v83 = vmax.f32 %v81, 0.0
    %v84 = vld [vmem:[%s4] sm:$0x1]
    %v86 = vperm.slane %v84, 0
    %v88 = vmul.f32 %v83, %v86
    %89 = vadd.xlane.f32.xlu0 %v88
    %v90 = vpop.xlane.xlu0 %89
    %s91 = sld [smem:[#allocation3]]
    %v92 = vstv %s91
    %v93 = vadd.f32 %v90, %v92
    %v95 = vlaneseq
    %v96 = vand.u32 %v95, 127
    %v97 = vperm.slane %v93, %v96
    %vm99 = vcmask 57344
    %100 = vst.msk [vmem:[#allocation9] sm:$0x1] %vm99, %v97
    // Predicated region
    $region26: #{tpu_custom_call.1} parent=1 // pred_check
      _
    $region27: #{tpu_custom_call.1} parent=1 // pred_check_branch
      %102 = sbr.rel (0) target = $region29
    $region28: #{tpu_custom_call.1} parent=1 // pred_region
      %104 = vsyncadd [#allocation6], 0
      %s106 = sshll.u32 [#allocation9], 4
      %s107 = int_to_ptr.vmem [resolvable:$true] %s106
      %s108 = sshll.u32 %s5, 4
      %s109 = int_to_ptr.hbm [resolvable:$true] %s108
      %111 = dma.vmem_to_hbm [thread:$0]  %s107, 16, %s109, [#allocation6]
    $region29: #{tpu_custom_call.1} parent=1 // pred_fallthru
      _
    // Predicated region
    $region30: #{tpu_custom_call.1} parent=1 // pred_check
      _
    $region31: #{tpu_custom_call.1} parent=1 // pred_check_branch
      %113 = sbr.rel (0) target = $region33
    $region32: #{tpu_custom_call.1} parent=1 // pred_region
      %115 = dma.done [#allocation6], 16
    $region33: #{tpu_custom_call.1} parent=1 // pred_fallthru
      _
    %116 = vsyncpa [#allocation5], 1
    %117 = vsyncpa [#allocation8], 1
    %118 = vsyncpa [#allocation6], 1

</llo_original>
